<compile_context>
chip_gen: v5e
topology: v5e:2x2
jax: 0.10.0
libtpu: 0.0.40
codegen_flags: <defaults>
</compile_context>

<pallas_src>
import functools

import jax
import jax.numpy as jnp
from jax.experimental import pallas as pl
from jax.experimental.pallas import tpu as pltpu


def _round_up(v, m):
    return (v + m - 1) // m * m


def _vmem_caps():
    """(per-block budget, vmem_limit_bytes), derived from the actual chip."""
    try:
        cap = int(pltpu.get_tpu_info().vmem_capacity_bytes)
    except Exception:
        cap = 64 << 20  # conservative: v7x per-TensorCore VMEM
    budget = int(cap * 0.55)
    limit = min(int(cap * 0.75), cap - (4 << 20))
    return budget, limit


def _choose_tc_single(bc, hw_lanes, itemsize, budget):
    """Instance-axis tile for the single-stage (whole-row-resident) path."""
    io_row = hw_lanes * itemsize            # actual DMA bytes per row (in or out)
    per_row = hw_lanes * (4 * itemsize + 8)  # 2x in + 2x out buffers + f32 temps
    target_block = 2 << 20                   # 1-4 MiB blocks all sit ~85% of HBM roofline
    tc = min(target_block // io_row, budget // per_row)
    bc8 = _round_up(bc, 8)
    tc = min(max(tc, 8), bc8)
    # Prefer >= 4 grid steps (2 per v7x TensorCore) when B*C allows; at least 2.
    steps = min(4, bc8 // 8)
    if steps >= 2:
        tc = min(tc, max(8, (bc8 // steps) // 8 * 8))
    return max(8, tc // 8 * 8)


# --------------------------------------------------------------------------
# Single-stage kernel: whole spatial row resident per tile.
# --------------------------------------------------------------------------
def _adain_kernel(x_ref, wb_ref, o_ref, *, eps, inv_hw, tc, bf16_epilogue):
    """x_ref/o_ref: (TC, HW); wb_ref: (BC_pad, 2) resident [weight | bias]."""
    i = pl.program_id(0)

    # Per-row pivot (first spatial element) tames E[x^2]-E[x]^2 cancellation.
    piv = x_ref[:, 0:1].astype(jnp.float32)                    # (TC, 1)
    xp = x_ref[...].astype(jnp.float32) - piv                  # single f32 temp
    s = jnp.sum(xp, axis=-1, keepdims=True) * inv_hw           # E[x] - pivot
    sq = jnp.sum(xp * xp, axis=-1, keepdims=True) * inv_hw     # E[(x-pivot)^2]
    var = jnp.maximum(sq - s * s, 0.0)                         # biased variance
    inv_std = jax.lax.rsqrt(var + eps)

    # Slice this tile's affine params from the resident (BC_pad, 2) table.
    start = pl.multiple_of(i * tc, 8)
    wb = wb_ref[pl.ds(start, tc), :].astype(jnp.float32)       # (TC, 2)
    a = inv_std * wb[:, 0:1]
    c = wb[:, 1:2] - (piv + s) * a

    # Fold normalize + affine into one y = x*a + c pass.
    if bf16_epilogue:
        o_ref[...] = x_ref[...] * a.astype(o_ref.dtype) + c.astype(o_ref.dtype)
    else:
        o_ref[...] = (x_ref[...].astype(jnp.float32) * a + c).astype(o_ref.dtype)


# --------------------------------------------------------------------------
# Two-stage kernels for very large H*W (spatial axis tiled).
# --------------------------------------------------------------------------
def _adain_stats_kernel(x_ref, wb_ref, ac_ref, sum_sc, sq_sc, piv_sc,
                        *, eps, hw, thw, tc):
    """Stage 1: accumulate pivoted (sum, sumsq) over spatial tiles -> (a, c)."""
    i = pl.program_id(0)                  # instance-axis tile (parallel)
    j = pl.program_id(1)                  # spatial tile (reduction, arbitrary)
    xf = x_ref[...].astype(jnp.float32)

    @pl.when(j == 0)
    def _():
        piv_sc[...] = xf[:, 0:1]          # column 0 is always a valid element
        sum_sc[...] = jnp.zeros_like(sum_sc)
        sq_sc[...] = jnp.zeros_like(sq_sc)

    # x is NOT padded: mask lanes past the true H*W on the boundary block.
    col = j * thw + jax.lax.broadcasted_iota(jnp.int32, (tc, thw), 1)
    xc = jnp.where(col < hw, xf - piv_sc[...], 0.0)
    sum_sc[...] += jnp.sum(xc, axis=-1, keepdims=True)
    sq_sc[...] += jnp.sum(xc * xc, axis=-1, keepdims=True)

    @pl.when(j == pl.num_programs(1) - 1)
    def _():
        inv_hw = 1.0 / hw
        m = sum_sc[...] * inv_hw                               # E[x] - pivot
        var = jnp.maximum(sq_sc[...] * inv_hw - m * m, 0.0)    # biased variance
        inv_std = jax.lax.rsqrt(var + eps)
        start = pl.multiple_of(i * tc, 8)
        wb = wb_ref[pl.ds(start, tc), :].astype(jnp.float32)   # (TC, 2)
        a = inv_std * wb[:, 0:1]
        c = wb[:, 1:2] - (piv_sc[...] + m) * a
        ac_ref[:, 0:1] = a
        ac_ref[:, 1:2] = c


def _adain_apply_kernel(ac_ref, x_ref, o_ref, *, tc, bf16_epilogue):
    """Stage 2: y = x*a + c with resident per-row (a, c)."""
    i = pl.program_id(0)
    start = pl.multiple_of(i * tc, 8)
    ac = ac_ref[pl.ds(start, tc), :]                           # (TC, 2) f32
    a = ac[:, 0:1]
    c = ac[:, 1:2]
    if bf16_epilogue:
        o_ref[...] = x_ref[...] * a.astype(o_ref.dtype) + c.astype(o_ref.dtype)
    else:
        o_ref[...] = (x_ref[...].astype(jnp.float32) * a + c).astype(o_ref.dtype)


# --------------------------------------------------------------------------
# Wrapper.
# --------------------------------------------------------------------------
def adaptive_instance_norm_2d(x, weight, bias, *, eps=1e-5, two_stage=None,
                              spatial_block=None, donate_x=False):
    """x: (B, C, H, W); weight, bias: (B*C,). Returns (B, C, H, W).

    two_stage / spatial_block are auto-chosen from VMEM capacity when None.
    donate_x=True aliases x's buffer to the output (only if x is dead after).
    """
    B, C, H, W = x.shape
    BC, HW = B * C, H * W
    assert weight.shape == (BC,) and bias.shape == (BC,)

    dt = x.dtype
    itemsize = int(dt.itemsize)
    bf16_epilogue = bool(dt == jnp.bfloat16)
    hw_lanes = _round_up(HW, 128)          # layout/VMEM accounting only; x not padded
    budget, vmem_limit = _vmem_caps()
    per_row = hw_lanes * (4 * itemsize + 8)

    if two_stage is None:
        # Minimum (8-row) tile would blow the budget or leave the 1-4 MiB sweet spot.
        two_stage = (8 * per_row > budget) or (8 * hw_lanes * itemsize > (8 << 20))

    x_flat = x.reshape(BC, HW)
    wb = jnp.stack([weight, bias], axis=-1).astype(jnp.float32)   # (BC, 2)

    if not two_stage:
        tc = _choose_tc_single(BC, hw_lanes, itemsize, budget)
        n_bc = pl.cdiv(BC, tc)
        bc_pad = n_bc * tc
        if bc_pad != BC:
            wb = jnp.pad(wb, ((0, bc_pad - BC), (0, 0)))

        out_flat = pl.pallas_call(
            functools.partial(_adain_kernel, eps=float(eps), inv_hw=1.0 / float(HW),
                              tc=tc, bf16_epilogue=bf16_epilogue),
            out_shape=jax.ShapeDtypeStruct((BC, HW), dt),
            grid_spec=pltpu.PrefetchScalarGridSpec(
                num_scalar_prefetch=0,
                grid=(n_bc,),
                in_specs=[
                    # Spatial block dim == full H*W -> no lane overhang to mask.
                    pl.BlockSpec((tc, HW), lambda i: (i, 0)),
                    # weight/bias resident in VMEM: constant block index -> one DMA.
                    pl.BlockSpec((bc_pad, 2), lambda i: (0, 0)),
                ],
                out_specs=pl.BlockSpec((tc, HW), lambda i: (i, 0)),
            ),
            compiler_params=pltpu.CompilerParams(
                dimension_semantics=("parallel",),
                vmem_limit_bytes=vmem_limit,
            ),
            input_output_aliases=({0: 0} if donate_x else {}),
        )(x_flat, wb)
        return out_flat.reshape(B, C, H, W)

    # ---- Two-stage path: spatial axis tiled ------------------------------
    tc = 8
    if spatial_block is None:
        thw = max(128, ((2 << 20) // (tc * itemsize)) // 128 * 128)
        thw = min(thw, _round_up(HW, 128))
    else:
        assert spatial_block % 128 == 0
        thw = spatial_block
    n_hw = pl.cdiv(HW, thw)
    n_bc = pl.cdiv(BC, tc)
    bc_pad = n_bc * tc
    if bc_pad != BC:
        wb = jnp.pad(wb, ((0, bc_pad - BC), (0, 0)))

    # Stage 1: per-row (a, c) from a streaming pivoted reduction over H*W.
    ac = pl.pallas_call(
        functools.partial(_adain_stats_kernel, eps=float(eps), hw=HW, thw=thw, tc=tc),
        out_shape=jax.ShapeDtypeStruct((bc_pad, 2), jnp.float32),
        grid_spec=pltpu.PrefetchScalarGridSpec(
            num_scalar_prefetch=0,
            grid=(n_bc, n_hw),
            in_specs=[
                pl.BlockSpec((tc, thw), lambda i, j: (i, j)),
                pl.BlockSpec((bc_pad, 2), lambda i, j: (0, 0)),
            ],
            out_specs=pl.BlockSpec((tc, 2), lambda i, j: (i, 0)),
            scratch_shapes=[pltpu.VMEM((tc, 1), jnp.float32)] * 3,
        ),
        compiler_params=pltpu.CompilerParams(
            dimension_semantics=("parallel", "arbitrary"),
            vmem_limit_bytes=vmem_limit,
        ),
    )(x_flat, wb)

    # Stage 2: y = x*a + c, fully parallel grid.
    out_flat = pl.pallas_call(
        functools.partial(_adain_apply_kernel, tc=tc, bf16_epilogue=bf16_epilogue),
        out_shape=jax.ShapeDtypeStruct((BC, HW), dt),
        grid_spec=pltpu.PrefetchScalarGridSpec(
            num_scalar_prefetch=0,
            grid=(n_bc, n_hw),
            in_specs=[
                pl.BlockSpec((bc_pad, 2), lambda i, j: (0, 0)),
                pl.BlockSpec((tc, thw), lambda i, j: (i, j)),
            ],
            out_specs=pl.BlockSpec((tc, thw), lambda i, j: (i, j)),
        ),
        compiler_params=pltpu.CompilerParams(
            dimension_semantics=("parallel", "parallel"),
            vmem_limit_bytes=vmem_limit,
        ),
        input_output_aliases=({1: 0} if donate_x else {}),
    )(ac, x_flat)
    return out_flat.reshape(B, C, H, W)


def _reference_adain(x, weight, bias, eps=1e-5):
    B, C, H, W = x.shape
    xf = x.reshape(B * C, H * W).astype(jnp.float32)
    mean = xf.mean(axis=-1, keepdims=True)
    var = ((xf - mean) ** 2).mean(axis=-1, keepdims=True)
    y = (xf - mean) / jnp.sqrt(var + eps)
    y = y * weight[:, None].astype(jnp.float32) + bias[:, None].astype(jnp.float32)
    return y.reshape(B, C, H, W).astype(x.dtype)


# TODO(synk): running_mean / running_var EMA buffer updates are module side
# effects that never influence the training-mode output, so they are omitted.

if __name__ == "__main__":
    key = jax.random.PRNGKey(0)
    kx, kw, kb = jax.random.split(key, 3)

    # 1) Aligned case (single-stage path), with a nonzero mean to stress the
    #    variance numerics.
    B, C, H, W = 2, 4, 16, 16
    x = jax.random.normal(kx, (B, C, H, W), dtype=jnp.float32) + 3.0
    weight = jax.random.normal(kw, (B * C,), dtype=jnp.float32) * 0.5 + 1.0
    bias = jax.random.normal(kb, (B * C,), dtype=jnp.float32) * 0.1
    out = jax.block_until_ready(adaptive_instance_norm_2d(x, weight, bias, eps=1e-5))
    ref = _reference_adain(x, weight, bias, eps=1e-5)
    assert out.shape == (B, C, H, W)
    assert jnp.allclose(out, ref, atol=1e-4, rtol=1e-4)

    # 2) Ragged case: B*C not a multiple of 8 and H*W not a multiple of 128
    #    (exercises overhanging boundary blocks with no wrapper-side padding).
    B2, C2, H2, W2 = 2, 3, 7, 9
    x2 = jax.random.normal(kx, (B2, C2, H2, W2), dtype=jnp.float32)
    wv2 = jax.random.normal(kw, (B2 * C2,), dtype=jnp.float32) * 0.5 + 1.0
    bv2 = jax.random.normal(kb, (B2 * C2,), dtype=jnp.float32) * 0.1
    out2 = jax.block_until_ready(adaptive_instance_norm_2d(x2, wv2, bv2, eps=1e-5))
    assert jnp.allclose(out2, _reference_adain(x2, wv2, bv2, eps=1e-5),
                        atol=1e-4, rtol=1e-4)

    # 3) Forced two-stage (large-H*W) path at a small shape: multiple spatial
    #    tiles, lane masking on the last tile, and instance-row overhang.
    B3, C3, H3, W3 = 1, 4, 10, 20
    x3 = jax.random.normal(kx, (B3, C3, H3, W3), dtype=jnp.float32) * 2.0 + 5.0
    wv3 = jax.random.normal(kw, (B3 * C3,), dtype=jnp.float32) * 0.5 + 1.0
    bv3 = jax.random.normal(kb, (B3 * C3,), dtype=jnp.float32) * 0.1
    out3 = jax.block_until_ready(
        adaptive_instance_norm_2d(x3, wv3, bv3, eps=1e-5,
                                  two_stage=True, spatial_block=128))
    assert jnp.allclose(out3, _reference_adain(x3, wv3, bv3, eps=1e-5),
                        atol=1e-4, rtol=1e-4)

    print("KERNEL_OK")
</pallas_src>

<mosaic_0001>
module attributes {stable_mosaic.version = 11 : i64} {
  func.func @_adain_kernel(%arg0: i32, %arg1: memref<8x256xf32, #tpu.memory_space<vmem>>, %arg2: memref<8x2xf32, #tpu.memory_space<vmem>>, %arg3: memref<8x256xf32, #tpu.memory_space<vmem>>) attributes {dimension_semantics = [#tpu.dimension_semantics<parallel>], iteration_bounds = array<i64: 1>, scalar_prefetch = 0 : i64, scratch_operands = 0 : i64, tpu.core_type = #tpu.core_type<tc>, window_params = [{transform_indices = @transform_0, window_bounds = array<i64: 8, 256>}, {pipeline_mode = #tpu.pipeline_mode<synchronous>, transform_indices = @transform_1, window_bounds = array<i64: 8, 2>}, {transform_indices = @transform_2, window_bounds = array<i64: 8, 256>}]} {
    %c0 = arith.constant 0 : index
    %c0_0 = arith.constant 0 : index
    %0 = vector.load %arg1[%c0, %c0_0] : memref<8x256xf32, #tpu.memory_space<vmem>>, vector<8x1xf32>
    %c0_1 = arith.constant 0 : index
    %c0_2 = arith.constant 0 : index
    %1 = vector.load %arg1[%c0_1, %c0_2] : memref<8x256xf32, #tpu.memory_space<vmem>>, vector<8x256xf32>
    %2 = vector.broadcast %0 : vector<8x1xf32> to vector<8x256xf32>
    %3 = arith.subf %1, %2 : vector<8x256xf32>
    %cst = arith.constant dense<0.000000e+00> : vector<8xf32>
    %4 = vector.multi_reduction <add>, %3, %cst [1] : vector<8x256xf32> to vector<8xf32>
    %5 = vector.shape_cast %4 : vector<8xf32> to vector<8x1xf32>
    %cst_3 = arith.constant 3.906250e-03 : f32
    %6 = vector.broadcast %cst_3 : f32 to vector<8x1xf32>
    %7 = arith.mulf %5, %6 : vector<8x1xf32>
    %8 = arith.mulf %3, %3 : vector<8x256xf32>
    %cst_4 = arith.constant dense<0.000000e+00> : vector<8xf32>
    %9 = vector.multi_reduction <add>, %8, %cst_4 [1] : vector<8x256xf32> to vector<8xf32>
    %10 = vector.shape_cast %9 : vector<8xf32> to vector<8x1xf32>
    %cst_5 = arith.constant 3.906250e-03 : f32
    %11 = vector.broadcast %cst_5 : f32 to vector<8x1xf32>
    %12 = arith.mulf %10, %11 : vector<8x1xf32>
    %13 = arith.mulf %7, %7 : vector<8x1xf32>
    %14 = arith.subf %12, %13 : vector<8x1xf32>
    %cst_6 = arith.constant 0.000000e+00 : f32
    %15 = vector.broadcast %cst_6 : f32 to vector<8x1xf32>
    %16 = arith.maximumf %14, %15 : vector<8x1xf32>
    %cst_7 = arith.constant 9.99999974E-6 : f32
    %17 = vector.broadcast %cst_7 : f32 to vector<8x1xf32>
    %18 = arith.addf %16, %17 : vector<8x1xf32>
    %19 = math.rsqrt %18 : vector<8x1xf32>
    %c8_i32 = arith.constant 8 : i32
    %20 = arith.muli %arg0, %c8_i32 : i32
    %21 = tpu.assume_multiple %20, 8 : i32
    %22 = arith.index_cast %21 : i32 to index
    %c0_8 = arith.constant 0 : index
    %23 = vector.load %arg2[%22, %c0_8] : memref<8x2xf32, #tpu.memory_space<vmem>>, vector<8x2xf32>
    %24 = vector.extract_strided_slice %23 {offsets = [0, 0], sizes = [8, 1], strides = [1, 1]} : vector<8x2xf32> to vector<8x1xf32>
    %25 = arith.mulf %19, %24 : vector<8x1xf32>
    %26 = vector.extract_strided_slice %23 {offsets = [0, 1], sizes = [8, 1], strides = [1, 1]} : vector<8x2xf32> to vector<8x1xf32>
    %27 = arith.addf %0, %7 : vector<8x1xf32>
    %28 = arith.mulf %27, %25 : vector<8x1xf32>
    %29 = arith.subf %26, %28 : vector<8x1xf32>
    %c0_9 = arith.constant 0 : index
    %c0_10 = arith.constant 0 : index
    %30 = vector.load %arg1[%c0_9, %c0_10] : memref<8x256xf32, #tpu.memory_space<vmem>>, vector<8x256xf32>
    %31 = vector.broadcast %25 : vector<8x1xf32> to vector<8x256xf32>
    %32 = arith.mulf %30, %31 : vector<8x256xf32>
    %33 = vector.broadcast %29 : vector<8x1xf32> to vector<8x256xf32>
    %34 = arith.addf %32, %33 : vector<8x256xf32>
    %c0_11 = arith.constant 0 : index
    %c0_12 = arith.constant 0 : index
    %35 = vector.load %arg3[%c0_11, %c0_12] : memref<8x256xf32, #tpu.memory_space<vmem>>, vector<8x256xf32>
    tpu.vector_store %arg3[%c0_11, %c0_12], %34 {strides = array<i32>} : memref<8x256xf32, #tpu.memory_space<vmem>>, vector<8x256xf32>,
    return
  }
  func.func @transform_0(%arg0: i32) -> (i32, i32) {
    %c0_i32 = arith.constant 0 : i32
    %c0_i32_0 = arith.constant 0 : i32
    return %arg0, %c0_i32 : i32, i32
  }
  func.func @transform_1(%arg0: i32) -> (i32, i32) {
    %c0_i32 = arith.constant 0 : i32
    %c0_i32_0 = arith.constant 0 : i32
    %c0_i32_1 = arith.constant 0 : i32
    return %c0_i32, %c0_i32_0 : i32, i32
  }
  func.func @transform_2(%arg0: i32) -> (i32, i32) {
    %c0_i32 = arith.constant 0 : i32
    %c0_i32_0 = arith.constant 0 : i32
    return %arg0, %c0_i32 : i32, i32
  }
}

</mosaic_0001>

<llo_original>
// kernel: tpu_custom_call.1
$region0: #{tpu_custom_call.1}
  #allocation0 [shape = 'u32[]', space=smem, size = 0x4, offset = 0x4, fixed_abs, tag = 'smem constant byte address 0x4 - core index']
  #allocation1 [shape = 'u32[72,128]{1,0:T(1,128)}', space=vmem, size = 0x9000, scoped, tag = 'internal scratch']
  %s0 = inlined_call_operand.hbm [shape: f32[8,256], index: 0, kind: input, shape index: {}]
  %s1 = inlined_call_operand.vmem [shape: f32[8,2], index: 1, kind: input, shape index: {}]
  %s2 = inlined_call_operand.hbm [shape: f32[8,256], index: 2, kind: output, shape index: {}]
  %s3 = sld [smem:[#allocation0]]
  $region22: #{tpu_custom_call.1} parent=0
    _
  %s5 = ssub.s32 1, %s3
  %s6 = scalar_select 0, %s5, %s3
  $region1: #{tpu_custom_call.1} parent=0
    #allocation2 [shape = 'u8[8192]{0}', space=vmem, size = 0x2000, scoped, tag = 'input window, operand 0, single buffered']
    #allocation3 [shape = 's32[1]{0}', space=sflag, size = 0x4, scoped, tag = 'scoped memory for tpu_custom_call.1']
    #allocation4 [shape = 's32[1]{0}', space=sflag, size = 0x4, scoped, tag = 'scoped memory for tpu_custom_call.1']
    #allocation5 [shape = 'u8[8192]{0}', space=vmem, size = 0x2000, scoped, tag = 'output window, operand 0, single buffered']
    %7 = vsyncpa [#allocation3], 0
    %8 = vsyncpa [#allocation4], 0
    // Predicated region
    $region2: #{tpu_custom_call.1} parent=1 // pred_check
      _
    $region3: #{tpu_custom_call.1} parent=1 // pred_check_branch
      %10 = sbr.rel (0) target = $region5
    $region4: #{tpu_custom_call.1} parent=1 // pred_region
      %12 = vsyncadd [#allocation3], 0
      %s14 = sshll.u32 %s0, 4
      %s15 = int_to_ptr.hbm [resolvable:$true] %s14
      %s16 = sshll.u32 [#allocation2], 4
      %s17 = int_to_ptr.vmem [resolvable:$true] %s16
      %19 = dma.hbm_to_vmem [thread:$0]  %s15, 256, %s17, [#allocation3]
    $region5: #{tpu_custom_call.1} parent=1 // pred_fallthru
      _
    // Predicated region
    $region6: #{tpu_custom_call.1} parent=1 // pred_check
      _
    $region7: #{tpu_custom_call.1} parent=1 // pred_check_branch
      %21 = sbr.rel (0) target = $region9
    $region8: #{tpu_custom_call.1} parent=1 // pred_region
      _
    $region9: #{tpu_custom_call.1} parent=1 // pred_fallthru
      _
    // Predicated region
    $region10: #{tpu_custom_call.1} parent=1 // pred_check
      _
    $region11: #{tpu_custom_call.1} parent=1 // pred_check_branch
      %23 = sbr.rel (0) target = $region13
    $region12: #{tpu_custom_call.1} parent=1 // pred_region
      %25 = dma.done [#allocation3], 256
    $region13: #{tpu_custom_call.1} parent=1 // pred_fallthru
      _
    %v26 = vld [vmem:[#allocation2] sm:$0xff]
    %v27 = vld [vmem:[#allocation2] sm:$0xff]
    %v28 = vld [vmem:[#allocation2 + $0x8] sm:$0xff]
    %30 = vset.pattern.permute.xlu0 0
    %31 = vperm.xlu0 %30, %v26
    %v32 = vpop.permute.xlu0 %31
    %v34 = vsub.f32 %v27, %v32
    %v35 = vsub.f32 %v28, %v32
    %v36 = vadd.f32 %v34, %v35
    %37 = vadd.xlane.f32.xlu0 %v36
    %v38 = vpop.xlane.xlu0 %37
    %v39 = vmul.f32 %v38, 0.00390625
    %v40 = vmul.f32 %v34, %v34
    %v41 = vmul.f32 %v35, %v35
    %v42 = vadd.f32 %v40, %v41
    %43 = vadd.xlane.f32.xlu0 %v42
    %v44 = vpop.xlane.xlu0 %43
    %v45 = vmul.f32 %v44, 0.00390625
    %v46 = vmul.f32 %v39, %v39
    %v47 = vsub.f32 %v45, %v46
    %v48 = vmax.f32 %v47, 0.0
    %v49 = vadd.f32 %v48, 1e-05
    %v50 = vrsqrt.pop %v49
    %v51 = vmul.f32 %v50, %v49
    %v52 = vmul.f32 %v51, %v50
    %v53 = vmul.f32 0.5, %v52
    %v54 = vsub.f32 1.5, %v53
    %v55 = vmul.f32 %v50, %v54
    %vm56 = vweird.f32 %v49
    %vm57 = vweird.f32 %v50
    %vm58 = vmor %vm56, %vm57
    %v59 = vsel %vm58, %v50, %v55
    %s60 = smul.u32 0, 8
    %s61 = scalar_lea.vmem %s1, %s60
    %v62 = vld [vmem:[%s61] sm:$0xff]
    %v63 = vmul.f32 %v59, %v62
    %v64 = vadd.f32 %v26, %v39
    %v65 = vmul.f32 %v64, %v63
    %67 = vrot.lane.b32.xlu0 %v65, 1
    %v68 = vpop.permute.xlu0 %67
    %v70 = vsub.f32 %v62, %v68
    %72 = vset.pattern.permute.xlu0 0
    %73 = vperm.xlu0 %72, %v63
    %v74 = vpop.permute.xlu0 %73
    %v76 = vmul.f32 %v27, %v74
    %v77 = vmul.f32 %v28, %v74
    %79 = vset.pattern.permute.xlu0 1
    %80 = vperm.xlu0 %79, %v70
    %v81 = vpop.permute.xlu0 %80
    %v83 = vadd.f32 %v76, %v81
    %v84 = vadd.f32 %v77, %v81
    %85 = vst [vmem:[#allocation5] sm:$0xff] %v83
    %86 = vst [vmem:[#allocation5 + $0x8] sm:$0xff] %v84
    // Predicated region
    $region14: #{tpu_custom_call.1} parent=1 // pred_check
      _
    $region15: #{tpu_custom_call.1} parent=1 // pred_check_branch
      %88 = sbr.rel (0) target = $region17
    $region16: #{tpu_custom_call.1} parent=1 // pred_region
      %90 = vsyncadd [#allocation4], 0
      %s92 = sshll.u32 [#allocation5], 4
      %s93 = int_to_ptr.vmem [resolvable:$true] %s92
      %s94 = sshll.u32 %s2, 4
      %s95 = int_to_ptr.hbm [resolvable:$true] %s94
      %97 = dma.vmem_to_hbm [thread:$0]  %s93, 256, %s95, [#allocation4]
    $region17: #{tpu_custom_call.1} parent=1 // pred_fallthru
      _
    // Predicated region
    $region18: #{tpu_custom_call.1} parent=1 // pred_check
      _
    $region19: #{tpu_custom_call.1} parent=1 // pred_check_branch
      %99 = sbr.rel (0) target = $region21
    $region20: #{tpu_custom_call.1} parent=1 // pred_region
      %101 = dma.done [#allocation4], 256
    $region21: #{tpu_custom_call.1} parent=1 // pred_fallthru
      _
    %102 = vsyncpa [#allocation3], 1
    %103 = vsyncpa [#allocation4], 1

</llo_original>
